<compile_context>
chip_gen: v7x
topology: tpu7x:2x2x1
jax: 0.10.0
libtpu: 0.0.40
codegen_flags: <defaults>
</compile_context>

<pallas_src>
import functools

import jax
import jax.numpy as jnp
from jax import lax
from jax.experimental import pallas as pl
from jax.experimental.pallas import tpu as pltpu

NUM_CLASSES = 6
NUM_TEXTS = 15          # proj head expects LayerNorm(15) -> 15 text candidates
HID1 = 12
HID2 = 7
EMBED_DIM = 512         # CLIP ViT-B/32 projection dim
LOGIT_SCALE = 100.0     # exp(log(1/0.07)) ~ CLIP's learned logit scale
LN_EPS = 1e-5
LANE = 128              # lane width for the padded, lane-dense output / param slabs

# weight-slab row offsets (rows are sublane-aligned groups)
_W1_ROW = 0             # rows 0..14  : w1 [15, 12]
_W2_ROW = 16            # rows 16..27 : w2 [12, 7]
_W3_ROW = 32            # rows 32..38 : w3 [7, 128] (cols >= NUM_CLASSES zero)
_WSLAB_ROWS = 40


def _round_up(x, m):
    return ((x + m - 1) // m) * m


def _layernorm(x, gamma, beta):
    mu = jnp.mean(x, axis=-1, keepdims=True)
    var = jnp.mean(jnp.square(x - mu), axis=-1, keepdims=True)
    return (x - mu) * lax.rsqrt(var + LN_EPS) * gamma + beta


def _gelu_exact(x):
    # PyTorch nn.GELU() default = exact erf formulation.
    return 0.5 * x * (1.0 + lax.erf(x * 0.7071067811865475))


def emoevent_kernel(img_ref, txt_ref, vec_ref, w_ref, out_ref):
    img = img_ref[...].astype(jnp.float32)                      # [tb, D]
    # image L2 normalization; LOGIT_SCALE is folded into the text operand.
    img_n = img * lax.rsqrt(jnp.sum(img * img, axis=-1, keepdims=True) + 1e-12)

    # txt_ref is pre-normalized, pre-scaled, pre-transposed: [D, T]
    logits = jnp.dot(img_n, txt_ref[...],
                     preferred_element_type=jnp.float32)        # [tb, T]

    vec = vec_ref[...]                                          # [8, 128]
    w = w_ref[...]                                              # [40, 128]
    ln1_g = vec[0:1, 0:NUM_TEXTS]
    ln1_b = vec[1:2, 0:NUM_TEXTS]
    b1 = vec[2:3, 0:HID1]
    b2 = vec[3:4, 0:HID2]
    ln2_g = vec[4:5, 0:HID2]
    ln2_b = vec[5:6, 0:HID2]
    w1 = w[_W1_ROW:_W1_ROW + NUM_TEXTS, 0:HID1]                 # [15, 12]
    w2 = w[_W2_ROW:_W2_ROW + HID1, 0:HID2]                      # [12, 7]
    w3 = w[_W3_ROW:_W3_ROW + HID2, :]                           # [7, 128]

    # proj head (Dropout layers are identity in eval mode)
    x = _layernorm(logits, ln1_g, ln1_b)                        # [tb, 15]
    x = _gelu_exact(jnp.dot(x, w1, preferred_element_type=jnp.float32) + b1)
    x = jnp.dot(x, w2, preferred_element_type=jnp.float32) + b2
    x = _layernorm(x, ln2_g, ln2_b)                             # [tb, 7]
    y = jnp.dot(x, w3, preferred_element_type=jnp.float32)      # [tb, 128] lane-dense
    out_ref[...] = y.astype(out_ref.dtype)


def init_params(key):
    """Deterministic parameter init mirroring the module's __init__ scheme.

    Linear weights are stored as [in, out] (already transposed vs torch)."""
    k1, k2, k3, k4, k5 = jax.random.split(key, 5)
    # kaiming_normal_(fan_out, relu): std = sqrt(2 / fan_out)
    w1 = jax.random.normal(k1, (NUM_TEXTS, HID1), jnp.float32) * jnp.sqrt(2.0 / HID1)
    b1 = jax.random.uniform(k4, (1, HID1), jnp.float32,
                            -1.0 / jnp.sqrt(15.0), 1.0 / jnp.sqrt(15.0))
    w2 = jax.random.normal(k2, (HID1, HID2), jnp.float32) * jnp.sqrt(2.0 / HID2)
    b2 = jax.random.uniform(k5, (1, HID2), jnp.float32,
                            -1.0 / jnp.sqrt(12.0), 1.0 / jnp.sqrt(12.0))
    # final classifier: normal(0, 0.02), no bias
    w3 = jax.random.normal(k3, (HID2, NUM_CLASSES), jnp.float32) * 0.02
    # LayerNorm default init: gamma=1, beta=0
    ln1_g = jnp.ones((1, NUM_TEXTS), jnp.float32)
    ln1_b = jnp.zeros((1, NUM_TEXTS), jnp.float32)
    ln2_g = jnp.ones((1, HID2), jnp.float32)
    ln2_b = jnp.zeros((1, HID2), jnp.float32)
    return (ln1_g, ln1_b, w1, b1, w2, b2, ln2_g, ln2_b, w3)


def _pack_params(params):
    """Pack the 9 tiny parameter arrays into two lane-padded f32 slabs."""
    (ln1_g, ln1_b, w1, b1, w2, b2, ln2_g, ln2_b, w3) = params
    vec = jnp.zeros((8, LANE), jnp.float32)
    vec = vec.at[0, :NUM_TEXTS].set(ln1_g.reshape(-1))
    vec = vec.at[1, :NUM_TEXTS].set(ln1_b.reshape(-1))
    vec = vec.at[2, :HID1].set(b1.reshape(-1))
    vec = vec.at[3, :HID2].set(b2.reshape(-1))
    vec = vec.at[4, :HID2].set(ln2_g.reshape(-1))
    vec = vec.at[5, :HID2].set(ln2_b.reshape(-1))

    wslab = jnp.zeros((_WSLAB_ROWS, LANE), jnp.float32)
    wslab = wslab.at[_W1_ROW:_W1_ROW + NUM_TEXTS, 0:HID1].set(w1)
    wslab = wslab.at[_W2_ROW:_W2_ROW + HID1, 0:HID2].set(w2)
    # zero-pad classifier to 128 output lanes -> lane-dense (tb, 128) stores
    wslab = wslab.at[_W3_ROW:_W3_ROW + HID2, 0:NUM_CLASSES].set(w3)
    return vec, wslab


def _pick_tile(B):
    """Batch tile: single tile for small B, ~512-2048-row tiles with an EVEN
    grid length for large B so the grid shards across v7x's two TensorCores."""
    if B <= 512:
        return _round_up(B, 8)
    n_tiles = max(2, 2 * ((B + 4095) // 4096))
    return _round_up((B + n_tiles - 1) // n_tiles, 8)


@functools.partial(jax.jit, static_argnames=("tb",))
def emoevent_forward(img_embeds, txt_embeds, params, *, tb=None):
    B, D = img_embeds.shape
    T, _ = txt_embeds.shape

    if tb is None:
        tb = _pick_tile(B)
    tb = _round_up(min(tb, _round_up(B, 8)), 8)
    B_pad = _round_up(B, tb)

    img = img_embeds
    if B_pad != B:
        img = jnp.pad(img, ((0, B_pad - B), (0, 0)))

    # Hoist text normalization / logit scale / transpose out of the kernel:
    # computed once, passed in as a [D, T] operand.
    txt = txt_embeds.astype(jnp.float32)
    txt_n = txt / jnp.linalg.norm(txt, axis=-1, keepdims=True)
    txt_kd = (LOGIT_SCALE * txt_n).T                            # [D, T]

    vec_slab, w_slab = _pack_params(params)

    # Raise scoped VMEM if tiles get big (v5e default is only 16 MiB).
    itemsize = jnp.dtype(img.dtype).itemsize
    vmem_est = (2 * tb * (D * itemsize + LANE * 4)              # img in + out, 2 bufs
                + 2 * (D * T + (8 + _WSLAB_ROWS) * LANE) * 4)   # replicated operands
    vmem_limit = int(min(max(32 << 20, vmem_est + (8 << 20)), 48 << 20))

    grid = (B_pad // tb,)
    full = lambda shape: pl.BlockSpec(shape, lambda i: (0, 0))
    grid_spec = pltpu.PrefetchScalarGridSpec(
        num_scalar_prefetch=0,
        grid=grid,
        in_specs=[
            pl.BlockSpec((tb, D), lambda i: (i, 0)),   # image embeds (tiled on batch)
            full((D, T)),                              # pre-normalized text, [D, T]
            full((8, LANE)),                           # vector-param slab
            full((_WSLAB_ROWS, LANE)),                 # weight slab
        ],
        out_specs=pl.BlockSpec((tb, LANE), lambda i: (i, 0)),
    )
    out = pl.pallas_call(
        emoevent_kernel,
        out_shape=jax.ShapeDtypeStruct((B_pad, LANE), jnp.float32),
        grid_spec=grid_spec,
        compiler_params=pltpu.CompilerParams(
            dimension_semantics=("parallel",),
            vmem_limit_bytes=vmem_limit),
    )(img, txt_kd, vec_slab, w_slab)
    return out[:B, :NUM_CLASSES]


def emoevent_reference(img_embeds, txt_embeds, params):
    (ln1_g, ln1_b, w1, b1, w2, b2, ln2_g, ln2_b, w3) = params
    img = img_embeds.astype(jnp.float32)
    txt = txt_embeds.astype(jnp.float32)
    img_n = img / jnp.linalg.norm(img, axis=-1, keepdims=True)
    txt_n = txt / jnp.linalg.norm(txt, axis=-1, keepdims=True)
    x = LOGIT_SCALE * img_n @ txt_n.T
    x = _layernorm(x, ln1_g, ln1_b)
    x = _gelu_exact(x @ w1 + b1)
    x = x @ w2 + b2
    x = _layernorm(x, ln2_g, ln2_b)
    return x @ w3


if __name__ == "__main__":
    key = jax.random.PRNGKey(0)
    k_img, k_txt, k_par = jax.random.split(key, 3)

    B = 16   # number of images (frames)
    # Synthetic stand-ins for CLIP image / text embeddings.
    # TODO(synk): the pretrained CLIPModel/CLIPProcessor encoders themselves are
    # external weights and are not reproduced here.
    img_embeds_f32 = jax.random.normal(k_img, (B, EMBED_DIM), jnp.float32)
    img_embeds = img_embeds_f32.astype(jnp.bfloat16)   # bf16 in HBM halves read traffic
    txt_embeds = jax.random.normal(k_txt, (NUM_TEXTS, EMBED_DIM), jnp.float32)
    params = init_params(k_par)

    logits = emoevent_forward(img_embeds, txt_embeds, params)
    jax.block_until_ready(logits)

    # Reference consumes the same (bf16-rounded) embeddings promoted to f32.
    ref = emoevent_reference(img_embeds.astype(jnp.float32), txt_embeds, params)
    assert logits.shape == (B, NUM_CLASSES)
    assert jnp.allclose(logits, ref, atol=1e-3, rtol=1e-3), "mismatch vs reference"

    print("KERNEL_OK")
</pallas_src>

<mosaic_0001>
module attributes {stable_mosaic.version = 11 : i64} {
  func.func @emoevent_kernel(%arg0: i32, %arg1: memref<16x512xbf16, #tpu.memory_space<vmem>>, %arg2: memref<512x15xf32, #tpu.memory_space<vmem>>, %arg3: memref<8x128xf32, #tpu.memory_space<vmem>>, %arg4: memref<40x128xf32, #tpu.memory_space<vmem>>, %arg5: memref<16x128xf32, #tpu.memory_space<vmem>>) attributes {dimension_semantics = [#tpu.dimension_semantics<parallel>], iteration_bounds = array<i64: 1>, scalar_prefetch = 0 : i64, scratch_operands = 0 : i64, tpu.core_type = #tpu.core_type<tc>, window_params = [{transform_indices = @transform_0, window_bounds = array<i64: 16, 512>}, {pipeline_mode = #tpu.pipeline_mode<synchronous>, transform_indices = @transform_1, window_bounds = array<i64: 512, 15>}, {pipeline_mode = #tpu.pipeline_mode<synchronous>, transform_indices = @transform_2, window_bounds = array<i64: 8, 128>}, {pipeline_mode = #tpu.pipeline_mode<synchronous>, transform_indices = @transform_3, window_bounds = array<i64: 40, 128>}, {transform_indices = @transform_4, window_bounds = array<i64: 16, 128>}]} {
    %c0 = arith.constant 0 : index
    %c0_0 = arith.constant 0 : index
    %0 = vector.load %arg1[%c0, %c0_0] : memref<16x512xbf16, #tpu.memory_space<vmem>>, vector<16x512xbf16>
    %1 = arith.extf %0 : vector<16x512xbf16> to vector<16x512xf32>
    %2 = arith.mulf %1, %1 : vector<16x512xf32>
    %cst = arith.constant dense<0.000000e+00> : vector<16xf32>
    %3 = vector.multi_reduction <add>, %2, %cst [1] : vector<16x512xf32> to vector<16xf32>
    %4 = vector.shape_cast %3 : vector<16xf32> to vector<16x1xf32>
    %cst_1 = arith.constant 9.99999996E-13 : f32
    %5 = vector.broadcast %cst_1 : f32 to vector<16x1xf32>
    %6 = arith.addf %4, %5 : vector<16x1xf32>
    %7 = math.rsqrt %6 : vector<16x1xf32>
    %8 = vector.broadcast %7 : vector<16x1xf32> to vector<16x512xf32>
    %9 = arith.mulf %1, %8 : vector<16x512xf32>
    %c0_2 = arith.constant 0 : index
    %c0_3 = arith.constant 0 : index
    %10 = vector.load %arg2[%c0_2, %c0_3] : memref<512x15xf32, #tpu.memory_space<vmem>>, vector<512x15xf32>
    %cst_4 = arith.constant dense<0.000000e+00> : vector<16x15xf32>
    %11 = tpu.matmul %9, %10, %cst_4 {dimension_numbers = #tpu.dot_dimension_numbers<[1], [0], [0], [1], [0, 0, 1, 1], [], []>} : vector<16x512xf32>, vector<512x15xf32>, vector<16x15xf32> -> vector<16x15xf32>
    %c0_5 = arith.constant 0 : index
    %c0_6 = arith.constant 0 : index
    %12 = vector.load %arg3[%c0_5, %c0_6] : memref<8x128xf32, #tpu.memory_space<vmem>>, vector<8x128xf32>
    %c0_7 = arith.constant 0 : index
    %c0_8 = arith.constant 0 : index
    %13 = vector.load %arg4[%c0_7, %c0_8] : memref<40x128xf32, #tpu.memory_space<vmem>>, vector<40x128xf32>
    %14 = vector.extract_strided_slice %12 {offsets = [0, 0], sizes = [1, 15], strides = [1, 1]} : vector<8x128xf32> to vector<1x15xf32>
    %15 = vector.extract_strided_slice %12 {offsets = [1, 0], sizes = [1, 15], strides = [1, 1]} : vector<8x128xf32> to vector<1x15xf32>
    %16 = vector.extract_strided_slice %12 {offsets = [2, 0], sizes = [1, 12], strides = [1, 1]} : vector<8x128xf32> to vector<1x12xf32>
    %17 = vector.extract_strided_slice %12 {offsets = [3, 0], sizes = [1, 7], strides = [1, 1]} : vector<8x128xf32> to vector<1x7xf32>
    %18 = vector.extract_strided_slice %12 {offsets = [4, 0], sizes = [1, 7], strides = [1, 1]} : vector<8x128xf32> to vector<1x7xf32>
    %19 = vector.extract_strided_slice %12 {offsets = [5, 0], sizes = [1, 7], strides = [1, 1]} : vector<8x128xf32> to vector<1x7xf32>
    %20 = vector.extract_strided_slice %13 {offsets = [0, 0], sizes = [15, 12], strides = [1, 1]} : vector<40x128xf32> to vector<15x12xf32>
    %21 = vector.extract_strided_slice %13 {offsets = [16, 0], sizes = [12, 7], strides = [1, 1]} : vector<40x128xf32> to vector<12x7xf32>
    %22 = vector.extract_strided_slice %13 {offsets = [32, 0], sizes = [7, 128], strides = [1, 1]} : vector<40x128xf32> to vector<7x128xf32>
    %cst_9 = arith.constant dense<0.000000e+00> : vector<16xf32>
    %23 = vector.multi_reduction <add>, %11, %cst_9 [1] : vector<16x15xf32> to vector<16xf32>
    %24 = vector.shape_cast %23 : vector<16xf32> to vector<16x1xf32>
    %cst_10 = arith.constant 1.500000e+01 : f32
    %25 = vector.broadcast %cst_10 : f32 to vector<16x1xf32>
    %26 = arith.divf %24, %25 : vector<16x1xf32>
    %27 = vector.broadcast %26 : vector<16x1xf32> to vector<16x15xf32>
    %28 = arith.subf %11, %27 : vector<16x15xf32>
    %29 = arith.mulf %28, %28 : vector<16x15xf32>
    %cst_11 = arith.constant dense<0.000000e+00> : vector<16xf32>
    %30 = vector.multi_reduction <add>, %29, %cst_11 [1] : vector<16x15xf32> to vector<16xf32>
    %31 = vector.shape_cast %30 : vector<16xf32> to vector<16x1xf32>
    %cst_12 = arith.constant 1.500000e+01 : f32
    %32 = vector.broadcast %cst_12 : f32 to vector<16x1xf32>
    %33 = arith.divf %31, %32 : vector<16x1xf32>
    %34 = vector.broadcast %26 : vector<16x1xf32> to vector<16x15xf32>
    %35 = arith.subf %11, %34 : vector<16x15xf32>
    %cst_13 = arith.constant 9.99999974E-6 : f32
    %36 = vector.broadcast %cst_13 : f32 to vector<16x1xf32>
    %37 = arith.addf %33, %36 : vector<16x1xf32>
    %38 = math.rsqrt %37 : vector<16x1xf32>
    %39 = vector.broadcast %38 : vector<16x1xf32> to vector<16x15xf32>
    %40 = arith.mulf %35, %39 : vector<16x15xf32>
    %41 = vector.broadcast %14 : vector<1x15xf32> to vector<16x15xf32>
    %42 = arith.mulf %40, %41 : vector<16x15xf32>
    %43 = vector.broadcast %15 : vector<1x15xf32> to vector<16x15xf32>
    %44 = arith.addf %42, %43 : vector<16x15xf32>
    %cst_14 = arith.constant dense<0.000000e+00> : vector<16x12xf32>
    %45 = tpu.matmul %44, %20, %cst_14 {dimension_numbers = #tpu.dot_dimension_numbers<[1], [0], [0], [1], [0, 0, 1, 1], [], []>} : vector<16x15xf32>, vector<15x12xf32>, vector<16x12xf32> -> vector<16x12xf32>
    %46 = vector.broadcast %16 : vector<1x12xf32> to vector<16x12xf32>
    %47 = arith.addf %45, %46 : vector<16x12xf32>
    %cst_15 = arith.constant 5.000000e-01 : f32
    %48 = vector.broadcast %cst_15 : f32 to vector<16x12xf32>
    %49 = arith.mulf %48, %47 : vector<16x12xf32>
    %cst_16 = arith.constant 0.707106769 : f32
    %50 = vector.broadcast %cst_16 : f32 to vector<16x12xf32>
    %51 = arith.mulf %47, %50 : vector<16x12xf32>
    %52 = math.erf %51 : vector<16x12xf32>
    %cst_17 = arith.constant 1.000000e+00 : f32
    %53 = vector.broadcast %cst_17 : f32 to vector<16x12xf32>
    %54 = arith.addf %53, %52 : vector<16x12xf32>
    %55 = arith.mulf %49, %54 : vector<16x12xf32>
    %cst_18 = arith.constant dense<0.000000e+00> : vector<16x7xf32>
    %56 = tpu.matmul %55, %21, %cst_18 {dimension_numbers = #tpu.dot_dimension_numbers<[1], [0], [0], [1], [0, 0, 1, 1], [], []>} : vector<16x12xf32>, vector<12x7xf32>, vector<16x7xf32> -> vector<16x7xf32>
    %57 = vector.broadcast %17 : vector<1x7xf32> to vector<16x7xf32>
    %58 = arith.addf %56, %57 : vector<16x7xf32>
    %cst_19 = arith.constant dense<0.000000e+00> : vector<16xf32>
    %59 = vector.multi_reduction <add>, %58, %cst_19 [1] : vector<16x7xf32> to vector<16xf32>
    %60 = vector.shape_cast %59 : vector<16xf32> to vector<16x1xf32>
    %cst_20 = arith.constant 7.000000e+00 : f32
    %61 = vector.broadcast %cst_20 : f32 to vector<16x1xf32>
    %62 = arith.divf %60, %61 : vector<16x1xf32>
    %63 = vector.broadcast %62 : vector<16x1xf32> to vector<16x7xf32>
    %64 = arith.subf %58, %63 : vector<16x7xf32>
    %65 = arith.mulf %64, %64 : vector<16x7xf32>
    %cst_21 = arith.constant dense<0.000000e+00> : vector<16xf32>
    %66 = vector.multi_reduction <add>, %65, %cst_21 [1] : vector<16x7xf32> to vector<16xf32>
    %67 = vector.shape_cast %66 : vector<16xf32> to vector<16x1xf32>
    %cst_22 = arith.constant 7.000000e+00 : f32
    %68 = vector.broadcast %cst_22 : f32 to vector<16x1xf32>
    %69 = arith.divf %67, %68 : vector<16x1xf32>
    %70 = vector.broadcast %62 : vector<16x1xf32> to vector<16x7xf32>
    %71 = arith.subf %58, %70 : vector<16x7xf32>
    %cst_23 = arith.constant 9.99999974E-6 : f32
    %72 = vector.broadcast %cst_23 : f32 to vector<16x1xf32>
    %73 = arith.addf %69, %72 : vector<16x1xf32>
    %74 = math.rsqrt %73 : vector<16x1xf32>
    %75 = vector.broadcast %74 : vector<16x1xf32> to vector<16x7xf32>
    %76 = arith.mulf %71, %75 : vector<16x7xf32>
    %77 = vector.broadcast %18 : vector<1x7xf32> to vector<16x7xf32>
    %78 = arith.mulf %76, %77 : vector<16x7xf32>
    %79 = vector.broadcast %19 : vector<1x7xf32> to vector<16x7xf32>
    %80 = arith.addf %78, %79 : vector<16x7xf32>
    %cst_24 = arith.constant dense<0.000000e+00> : vector<16x128xf32>
    %81 = tpu.matmul %80, %22, %cst_24 {dimension_numbers = #tpu.dot_dimension_numbers<[1], [0], [0], [1], [0, 0, 1, 1], [], []>} : vector<16x7xf32>, vector<7x128xf32>, vector<16x128xf32> -> vector<16x128xf32>
    %c0_25 = arith.constant 0 : index
    %c0_26 = arith.constant 0 : index
    %82 = vector.load %arg5[%c0_25, %c0_26] : memref<16x128xf32, #tpu.memory_space<vmem>>, vector<16x128xf32>
    tpu.vector_store %arg5[%c0_25, %c0_26], %81 {strides = array<i32>} : memref<16x128xf32, #tpu.memory_space<vmem>>, vector<16x128xf32>,
    return
  }
  func.func @transform_0(%arg0: i32) -> (i32, i32) {
    %c0_i32 = arith.constant 0 : i32
    %c0_i32_0 = arith.constant 0 : i32
    return %arg0, %c0_i32 : i32, i32
  }
  func.func @transform_1(%arg0: i32) -> (i32, i32) {
    %c0_i32 = arith.constant 0 : i32
    %c0_i32_0 = arith.constant 0 : i32
    %c0_i32_1 = arith.constant 0 : i32
    return %c0_i32, %c0_i32_0 : i32, i32
  }
  func.func @transform_2(%arg0: i32) -> (i32, i32) {
    %c0_i32 = arith.constant 0 : i32
    %c0_i32_0 = arith.constant 0 : i32
    %c0_i32_1 = arith.constant 0 : i32
    return %c0_i32, %c0_i32_0 : i32, i32
  }
  func.func @transform_3(%arg0: i32) -> (i32, i32) {
    %c0_i32 = arith.constant 0 : i32
    %c0_i32_0 = arith.constant 0 : i32
    %c0_i32_1 = arith.constant 0 : i32
    return %c0_i32, %c0_i32_0 : i32, i32
  }
  func.func @transform_4(%arg0: i32) -> (i32, i32) {
    %c0_i32 = arith.constant 0 : i32
    %c0_i32_0 = arith.constant 0 : i32
    return %arg0, %c0_i32 : i32, i32
  }
}

</mosaic_0001>

<llo_original>
// kernel: emoevent_forward.1
$region0: #{emoevent_forward.1}
  #allocation0 [shape = 'u32[]', space=smem, size = 0x4, offset = 0x4, fixed_abs, tag = 'smem constant byte address 0x4 - core index']
  #allocation1 [shape = 'u32[144,128]{1,0:T(1,128)}', space=vmem, size = 0x12000, scoped, tag = 'internal scratch']
  %s0 = inlined_call_operand.vmem [shape: bf16[16,512], index: 0, kind: input, shape index: {}]
  %s1 = inlined_call_operand.vmem [shape: f32[512,15], index: 1, kind: input, shape index: {}]
  %s2 = inlined_call_operand.vmem [shape: f32[8,128], index: 2, kind: input, shape index: {}]
  %s3 = inlined_call_operand.vmem [shape: f32[40,128], index: 3, kind: input, shape index: {}]
  %s4 = inlined_call_operand.vmem [shape: f32[16,128], index: 4, kind: output, shape index: {}]
  %s5 = sld [smem:[#allocation0]]
  $region26: #{emoevent_forward.1} parent=0
    _
  %s7 = ssub.s32 1, %s5
  %s8 = scalar_select 0, %s7, %s5
  // Predicated region
  $region2: #{emoevent_forward.1} parent=0 // pred_check
    _
  $region3: #{emoevent_forward.1} parent=0 // pred_check_branch
    %10 = sbr.rel (0) target = $region5
  $region4: #{emoevent_forward.1} parent=0 // pred_region
    _
  $region5: #{emoevent_forward.1} parent=0 // pred_fallthru
    _
  // Predicated region
  $region6: #{emoevent_forward.1} parent=0 // pred_check
    _
  $region7: #{emoevent_forward.1} parent=0 // pred_check_branch
    %12 = sbr.rel (0) target = $region9
  $region8: #{emoevent_forward.1} parent=0 // pred_region
    _
  $region9: #{emoevent_forward.1} parent=0 // pred_fallthru
    _
  // Predicated region
  $region10: #{emoevent_forward.1} parent=0 // pred_check
    _
  $region11: #{emoevent_forward.1} parent=0 // pred_check_branch
    %14 = sbr.rel (0) target = $region13
  $region12: #{emoevent_forward.1} parent=0 // pred_region
    _
  $region13: #{emoevent_forward.1} parent=0 // pred_fallthru
    _
  // Predicated region
  $region14: #{emoevent_forward.1} parent=0 // pred_check
    _
  $region15: #{emoevent_forward.1} parent=0 // pred_check_branch
    %16 = sbr.rel (0) target = $region17
  $region16: #{emoevent_forward.1} parent=0 // pred_region
    _
  $region17: #{emoevent_forward.1} parent=0 // pred_fallthru
    _
  %v17 = vld [vmem:[%s0] sm:$0xff]
  %v18 = vld [vmem:[%s0 + $0x8] sm:$0xff]
  %v19 = vld [vmem:[%s0 + $0x10] sm:$0xff]
  %v20 = vld [vmem:[%s0 + $0x18] sm:$0xff]
  %v21 = vunpack.c.l.bf16 %v17
  %v22 = vunpack.c.h.bf16 %v17
  %v23 = vunpack.c.l.bf16 %v18
  %v24 = vunpack.c.h.bf16 %v18
  %v25 = vunpack.c.l.bf16 %v19
  %v26 = vunpack.c.h.bf16 %v19
  %v27 = vunpack.c.l.bf16 %v20
  %v28 = vunpack.c.h.bf16 %v20
  %v29 = vmul.f32 %v21, %v21
  %v30 = vmul.f32 %v22, %v22
  %v31 = vmul.f32 %v23, %v23
  %v32 = vmul.f32 %v24, %v24
  %v33 = vmul.f32 %v25, %v25
  %v34 = vmul.f32 %v26, %v26
  %v35 = vmul.f32 %v27, %v27
  %v36 = vmul.f32 %v28, %v28
  %v37 = vadd.f32 %v29, %v30
  %v38 = vadd.f32 %v37, %v31
  %v39 = vadd.f32 %v38, %v32
  %40 = vadd.xlane.f32.xlu0 %v39
  %v41 = vpop.xlane.xlu0 %40
  %v42 = vadd.f32 %v33, %v34
  %v43 = vadd.f32 %v42, %v35
  %v44 = vadd.f32 %v43, %v36
  %45 = vadd.xlane.f32.xlu0 %v44
  %v46 = vpop.xlane.xlu0 %45
  %v47 = vadd.f32 %v41, 1e-12
  %v48 = vadd.f32 %v46, 1e-12
  %v49 = vrsqrt.pop %v47
  %v50 = vrsqrt.pop %v48
  %v51 = vmul.f32 %v21, %v49
  %v52 = vmul.f32 %v22, %v49
  %v53 = vmul.f32 %v23, %v49
  %v54 = vmul.f32 %v24, %v49
  %v55 = vmul.f32 %v25, %v50
  %v56 = vmul.f32 %v26, %v50
  %v57 = vmul.f32 %v27, %v50
  %v58 = vmul.f32 %v28, %v50
  %v59 = vld [vmem:[%s1] sm:$0xff]
  %v60 = vld [vmem:[%s1 + $0x8] sm:$0xff]
  %v61 = vld [vmem:[%s1 + $0x10] sm:$0xff]
  %v62 = vld [vmem:[%s1 + $0x18] sm:$0xff]
  %v63 = vld [vmem:[%s1 + $0x20] sm:$0xff]
  %v64 = vld [vmem:[%s1 + $0x28] sm:$0xff]
  %v65 = vld [vmem:[%s1 + $0x30] sm:$0xff]
  %v66 = vld [vmem:[%s1 + $0x38] sm:$0xff]
  %v67 = vld [vmem:[%s1 + $0x40] sm:$0xff]
  %v68 = vld [vmem:[%s1 + $0x48] sm:$0xff]
  %v69 = vld [vmem:[%s1 + $0x50] sm:$0xff]
  %v70 = vld [vmem:[%s1 + $0x58] sm:$0xff]
  %v71 = vld [vmem:[%s1 + $0x60] sm:$0xff]
  %v72 = vld [vmem:[%s1 + $0x68] sm:$0xff]
  %v73 = vld [vmem:[%s1 + $0x70] sm:$0xff]
  %v74 = vld [vmem:[%s1 + $0x78] sm:$0xff]
  %v75 = vld [vmem:[%s1 + $0x80] sm:$0xff]
  %v76 = vld [vmem:[%s1 + $0x88] sm:$0xff]
  %v77 = vld [vmem:[%s1 + $0x90] sm:$0xff]
  %v78 = vld [vmem:[%s1 + $0x98] sm:$0xff]
  %v79 = vld [vmem:[%s1 + $0xa0] sm:$0xff]
  %v80 = vld [vmem:[%s1 + $0xa8] sm:$0xff]
  %v81 = vld [vmem:[%s1 + $0xb0] sm:$0xff]
  %v82 = vld [vmem:[%s1 + $0xb8] sm:$0xff]
  %v83 = vld [vmem:[%s1 + $0xc0] sm:$0xff]
  %v84 = vld [vmem:[%s1 + $0xc8] sm:$0xff]
  %v85 = vld [vmem:[%s1 + $0xd0] sm:$0xff]
  %v86 = vld [vmem:[%s1 + $0xd8] sm:$0xff]
  %v87 = vld [vmem:[%s1 + $0xe0] sm:$0xff]
  %v88 = vld [vmem:[%s1 + $0xe8] sm:$0xff]
  %v89 = vld [vmem:[%s1 + $0xf0] sm:$0xff]
  %v90 = vld [vmem:[%s1 + $0xf8] sm:$0xff]
  %v91 = vld [vmem:[%s1 + $0x100] sm:$0xff]
  %v92 = vld [vmem:[%s1 + $0x108] sm:$0xff]
  %v93 = vld [vmem:[%s1 + $0x110] sm:$0xff]
  %v94 = vld [vmem:[%s1 + $0x118] sm:$0xff]
  %v95 = vld [vmem:[%s1 + $0x120] sm:$0xff]
  %v96 = vld [vmem:[%s1 + $0x128] sm:$0xff]
  %v97 = vld [vmem:[%s1 + $0x130] sm:$0xff]
  %v98 = vld [vmem:[%s1 + $0x138] sm:$0xff]
  %v99 = vld [vmem:[%s1 + $0x140] sm:$0xff]
  %v100 = vld [vmem:[%s1 + $0x148] sm:$0xff]
  %v101 = vld [vmem:[%s1 + $0x150] sm:$0xff]
  %v102 = vld [vmem:[%s1 + $0x158] sm:$0xff]
  %v103 = vld [vmem:[%s1 + $0x160] sm:$0xff]
  %v104 = vld [vmem:[%s1 + $0x168] sm:$0xff]
  %v105 = vld [vmem:[%s1 + $0x170] sm:$0xff]
  %v106 = vld [vmem:[%s1 + $0x178] sm:$0xff]
  %v107 = vld [vmem:[%s1 + $0x180] sm:$0xff]
  %v108 = vld [vmem:[%s1 + $0x188] sm:$0xff]
  %v109 = vld [vmem:[%s1 + $0x190] sm:$0xff]
  %v110 = vld [vmem:[%s1 + $0x198] sm:$0xff]
  %v111 = vld [vmem:[%s1 + $0x1a0] sm:$0xff]
  %v112 = vld [vmem:[%s1 + $0x1a8] sm:$0xff]
  %v113 = vld [vmem:[%s1 + $0x1b0] sm:$0xff]
  %v114 = vld [vmem:[%s1 + $0x1b8] sm:$0xff]
  %v115 = vld [vmem:[%s1 + $0x1c0] sm:$0xff]
  %v116 = vld [vmem:[%s1 + $0x1c8] sm:$0xff]
  %v117 = vld [vmem:[%s1 + $0x1d0] sm:$0xff]
  %v118 = vld [vmem:[%s1 + $0x1d8] sm:$0xff]
  %v119 = vld [vmem:[%s1 + $0x1e0] sm:$0xff]
  %v120 = vld [vmem:[%s1 + $0x1e8] sm:$0xff]
  %v121 = vld [vmem:[%s1 + $0x1f0] sm:$0xff]
  %v122 = vld [vmem:[%s1 + $0x1f8] sm:$0xff]
  %123 = vmatprep.subr.mxu0 0.0
  %124 = vmatpush1.msra.mxu0 %v59
  %125 = vmatprep.subr.mxu0 0.0
  %126 = vmatpush1.msra.mxu0 %v60
  %127 = vmatprep.subr.mxu0 0.0
  %128 = vmatpush1.msra.mxu0 %v61
  %129 = vmatprep.subr.mxu0 0.0
  %130 = vmatpush1.msra.mxu0 %v62
  %131 = vmatprep.subr.mxu0 0.0
  %132 = vmatpush1.msra.mxu0 %v63
  %133 = vmatprep.subr.mxu0 0.0
  %134 = vmatpush1.msra.mxu0 %v64
  %135 = vmatprep.subr.mxu0 0.0
  %136 = vmatpush1.msra.mxu0 %v65
  %137 = vmatprep.subr.mxu0 0.0
  %138 = vmatpush1.msra.mxu0 %v66
  %139 = vmatprep.subr.mxu0 0.0
  %140 = vmatpush1.msra.mxu0 %v67
  %141 = vmatprep.subr.mxu0 0.0
  %142 = vmatpush1.msra.mxu0 %v68
  %143 = vmatprep.subr.mxu0 0.0
  %144 = vmatpush1.msra.mxu0 %v69
  %145 = vmatprep.subr.mxu0 0.0
  %146 = vmatpush1.msra.mxu0 %v70
  %147 = vmatprep.subr.mxu0 0.0
  %148 = vmatpush1.msra.mxu0 %v71
  %149 = vmatprep.subr.mxu0 0.0
  %150 = vmatpush1.msra.mxu0 %v72
  %151 = vmatprep.subr.mxu0 0.0
  %152 = vmatpush1.msra.mxu0 %v73
  %153 = vmatprep.subr.mxu0 0.0
  %154 = vmatpush1.msra.mxu0 %v74
  %155 = vmatprep.subr.mxu0 0.0
  %156 = vmatpush1.msra.mxu0 %v75
  %157 = vmatprep.subr.mxu0 0.0
  %158 = vmatpush1.msra.mxu0 %v76
  %159 = vmatprep.subr.mxu0 0.0
  %160 = vmatpush1.msra.mxu0 %v77
  %161 = vmatprep.subr.mxu0 0.0
  %162 = vmatpush1.msra.mxu0 %v78
  %163 = vmatprep.subr.mxu0 0.0
  %164 = vmatpush1.msra.mxu0 %v79
  %165 = vmatprep.subr.mxu0 0.0
  %166 = vmatpush1.msra.mxu0 %v80
  %167 = vmatprep.subr.mxu0 0.0
  %168 = vmatpush1.msra.mxu0 %v81
  %169 = vmatprep.subr.mxu0 0.0
  %170 = vmatpush1.msra.mxu0 %v82
  %171 = vmatprep.subr.mxu0 0.0
  %172 = vmatpush1.msra.mxu0 %v83
  %173 = vmatprep.subr.mxu0 0.0
  %174 = vmatpush1.msra.mxu0 %v84
  %175 = vmatprep.subr.mxu0 0.0
  %176 = vmatpush1.msra.mxu0 %v85
  %177 = vmatprep.subr.mxu0 0.0
  %178 = vmatpush1.msra.mxu0 %v86
  %179 = vmatprep.subr.mxu0 0.0
  %180 = vmatpush1.msra.mxu0 %v87
  %181 = vmatprep.subr.mxu0 0.0
  %182 = vmatpush1.msra.mxu0 %v88
  %183 = vmatprep.subr.mxu0 0.0
  %184 = vmatpush1.msra.mxu0 %v89
  %185 = vmatprep.subr.mxu0 0.0
  %186 = vmatpush1.msra.mxu0 %v90
  %187 = vmatprep.mubr.f32.mxu0 %v52
  %188 = vmatmul.mubr.f32.gmra.mrb[0].mxu0 %v51
  %v189 = vpop.f32.mrb[0].mxu0
  %v190 = vadd.f32 0.0, %v189
  %v191 = vpop.f32.mrb[0].mxu0
  %192 = vmatprep.mubr.f32.mxu0 %v56
  %193 = vmatmul.mubr.f32.gmra.mrb[0].mxu0 %v55
  %v194 = vpop.f32.mrb[0].mxu0
  %v195 = vadd.f32 0.0, %v194
  %v196 = vpop.f32.mrb[0].mxu0
  %197 = vdwg.mxu0
  %198 = vmatprep.subr.mxu0 0.0
  %199 = vmatpush1.msra.mxu0 %v91
  %200 = vmatprep.subr.mxu0 0.0
  %201 = vmatpush1.msra.mxu0 %v92
  %202 = vmatprep.subr.mxu0 0.0
  %203 = vmatpush1.msra.mxu0 %v93
  %204 = vmatprep.subr.mxu0 0.0
  %205 = vmatpush1.msra.mxu0 %v94
  %206 = vmatprep.subr.mxu0 0.0
  %207 = vmatpush1.msra.mxu0 %v95
  %208 = vmatprep.subr.mxu0 0.0
  %209 = vmatpush1.msra.mxu0 %v96
  %210 = vmatprep.subr.mxu0 0.0
  %211 = vmatpush1.msra.mxu0 %v97
  %212 = vmatprep.subr.mxu0 0.0
  %213 = vmatpush1.msra.mxu0 %v98
  %214 = vmatprep.subr.mxu0 0.0
  %215 = vmatpush1.msra.mxu0 %v99
  %216 = vmatprep.subr.mxu0 0.0
  %217 = vmatpush1.msra.mxu0 %v100
  %218 = vmatprep.subr.mxu0 0.0
  %219 = vmatpush1.msra.mxu0 %v101
  %220 = vmatprep.subr.mxu0 0.0
  %221 = vmatpush1.msra.mxu0 %v102
  %222 = vmatprep.subr.mxu0 0.0
  %223 = vmatpush1.msra.mxu0 %v103
  %224 = vmatprep.subr.mxu0 0.0
  %225 = vmatpush1.msra.mxu0 %v104
  %226 = vmatprep.subr.mxu0 0.0
  %227 = vmatpush1.msra.mxu0 %v105
  %228 = vmatprep.subr.mxu0 0.0
  %229 = vmatpush1.msra.mxu0 %v106
  %230 = vmatprep.subr.mxu0 0.0
  %231 = vmatpush1.msra.mxu0 %v107
  %232 = vmatprep.subr.mxu0 0.0
  %233 = vmatpush1.msra.mxu0 %v108
  %234 = vmatprep.subr.mxu0 0.0
  %235 = vmatpush1.msra.mxu0 %v109
  %236 = vmatprep.subr.mxu0 0.0
  %237 = vmatpush1.msra.mxu0 %v110
  %238 = vmatprep.subr.mxu0 0.0
  %239 = vmatpush1.msra.mxu0 %v111
  %240 = vmatprep.subr.mxu0 0.0
  %241 = vmatpush1.msra.mxu0 %v112
  %242 = vmatprep.subr.mxu0 0.0
  %243 = vmatpush1.msra.mxu0 %v113
  %244 = vmatprep.subr.mxu0 0.0
  %245 = vmatpush1.msra.mxu0 %v114
  %246 = vmatprep.subr.mxu0 0.0
  %247 = vmatpush1.msra.mxu0 %v115
  %248 = vmatprep.subr.mxu0 0.0
  %249 = vmatpush1.msra.mxu0 %v116
  %250 = vmatprep.subr.mxu0 0.0
  %251 = vmatpush1.msra.mxu0 %v117
  %252 = vmatprep.subr.mxu0 0.0
  %253 = vmatpush1.msra.mxu0 %v118
  %254 = vmatprep.subr.mxu0 0.0
  %255 = vmatpush1.msra.mxu0 %v119
  %256 = vmatprep.subr.mxu0 0.0
  %257 = vmatpush1.msra.mxu0 %v120
  %258 = vmatprep.subr.mxu0 0.0
  %259 = vmatpush1.msra.mxu0 %v121
  %260 = vmatprep.subr.mxu0 0.0
  %261 = vmatpush1.msra.mxu0 %v122
  %262 = vmatprep.mubr.f32.mxu0 %v54
  %263 = vmatmul.mubr.f32.gmra.mrb[0].mxu0 %v53
  %v264 = vpop.f32.mrb[0].mxu0
  %v265 = vadd.f32 %v190, %v264
  %v266 = vpop.f32.mrb[0].mxu0
  %267 = vmatprep.mubr.f32.mxu0 %v58
  %268 = vmatmul.mubr.f32.gmra.mrb[0].mxu0 %v57
  %v269 = vpop.f32.mrb[0].mxu0
  %v270 = vadd.f32 %v195, %v269
  %v271 = vpop.f32.mrb[0].mxu0
  %272 = vdwg.mxu0
  %v273 = vld [vmem:[%s2] sm:$0xff]
  %v274 = vld [vmem:[%s3] sm:$0xff]
  %v275 = vld [vmem:[%s3 + $0x8] sm:$0xff]
  %v276 = vld [vmem:[%s3 + $0x10] sm:$0xff]
  %v277 = vld [vmem:[%s3 + $0x18] sm:$0xff]
  %v278 = vld [vmem:[%s3 + $0x20] sm:$0xff]
  %vm279 = vcmask 121856
  %v280 = vsel %vm279, %v265, 0.0
  %281 = vadd.xlane.f32.xlu0 %v280
  %v282 = vpop.xlane.xlu0 %281
  %v283 = vsel %vm279, %v270, 0.0
  %284 = vadd.xlane.f32.xlu0 %v283
  %v285 = vpop.xlane.xlu0 %284
  %v286 = vrcp.pop 15.0
  %v287 = vmul.f32 %v282, %v286
  %v288 = vmul.f32 %v285, %v286
  %v289 = vsub.f32 %v265, %v287
  %v290 = vsub.f32 %v270, %v288
  %v291 = vmul.f32 %v289, %v289
  %v292 = vmul.f32 %v290, %v290
  %v293 = vsel %vm279, %v291, 0.0
  %294 = vadd.xlane.f32.xlu0 %v293
  %v295 = vpop.xlane.xlu0 %294
  %v296 = vsel %vm279, %v292, 0.0
  %297 = vadd.xlane.f32.xlu0 %v296
  %v298 = vpop.xlane.xlu0 %297
  %v299 = vmul.f32 %v295, %v286
  %v300 = vmul.f32 %v298, %v286
  %v301 = vadd.f32 %v299, 1e-05
  %v302 = vadd.f32 %v300, 1e-05
  %v303 = vrsqrt.pop %v301
  %v304 = vrsqrt.pop %v302
  %v305 = vmul.f32 %v289, %v303
  %v306 = vmul.f32 %v290, %v304
  %v307 = vlaneseq
  %v308 = vshrl.u32 %v307, 7
  %v309 = vsub.s32 0, %v308
  %v310 = vrot.slane %v273, %v309
  %v311 = vmul.f32 %v305, %v310
  %v312 = vmul.f32 %v306, %v310
  %v313 = vlaneseq
  %v314 = vshrl.u32 %v313, 7
  %v315 = vsub.s32 1, %v314
  %v316 = vrot.slane %v273, %v315
  %v317 = vadd.f32 %v311, %v316
  %v318 = vadd.f32 %v312, %v316
  %v319 = vlaneseq
  %v320 = vshrl.u32 %v319, 7
  %v321 = vsub.s32 2, %v320
  %v322 = vrot.slane %v273, %v321
  %v324 = vsel %vm279, %v317, 0
  %v327 = vsel %vm279, %v318, 0
  %vm329 = vcmask 1046528
  %v331 = vsel %vm329, %v275, 0
  %333 = vmatprep.subr.mxu0 0.0
  %334 = vmatpush1.msra.mxu0 %v274
  %335 = vmatprep.subr.mxu0 0.0
  %336 = vmatpush1.msra.mxu0 %v331
  %337 = vmatprep.subr.mxu0 0.0
  %338 = vmatpush1.msra.mxu0 0.0
  %339 = vmatprep.subr.mxu0 0.0
  %340 = vmatpush1.msra.mxu0 0.0
  %341 = vmatprep.subr.mxu0 0.0
  %342 = vmatpush1.msra.mxu0 0.0
  %343 = vmatprep.subr.mxu0 0.0
  %344 = vmatpush1.msra.mxu0 0.0
  %345 = vmatprep.subr.mxu0 0.0
  %346 = vmatpush1.msra.mxu0 0.0
  %347 = vmatprep.subr.mxu0 0.0
  %348 = vmatpush1.msra.mxu0 0.0
  %349 = vmatprep.subr.mxu0 0.0
  %350 = vmatpush1.msra.mxu0 0.0
  %351 = vmatprep.subr.mxu0 0.0
  %352 = vmatpush1.msra.mxu0 0.0
  %353 = vmatprep.subr.mxu0 0.0
  %354 = vmatpush1.msra.mxu0 0.0
  %355 = vmatprep.subr.mxu0 0.0
  %356 = vmatpush1.msra.mxu0 0.0
  %357 = vmatprep.subr.mxu0 0.0
  %358 = vmatpush1.msra.mxu0 0.0
  %359 = vmatprep.subr.mxu0 0.0
  %360 = vmatpush1.msra.mxu0 0.0
  %361 = vmatprep.subr.mxu0 0.0
  %362 = vmatpush1.msra.mxu0 0.0
  %363 = vmatprep.subr.mxu0 0.0
  %364 = vmatpush1.msra.mxu0 0.0
  %365 = vmatprep.subr.mxu0 0.0
  %366 = vmatpush1.msra.mxu0 0.0
  %367 = vmatprep.subr.mxu0 0.0
  %368 = vmatpush1.msra.mxu0 0.0
  %369 = vmatprep.subr.mxu0 0.0
  %370 = vmatpush1.msra.mxu0 0.0
  %371 = vmatprep.subr.mxu0 0.0
  %372 = vmatpush1.msra.mxu0 0.0
  %373 = vmatprep.subr.mxu0 0.0
  %374 = vmatpush1.msra.mxu0 0.0
  %375 = vmatprep.subr.mxu0 0.0
  %376 = vmatpush1.msra.mxu0 0.0
  %377 = vmatprep.subr.mxu0 0.0
  %378 = vmatpush1.msra.mxu0 0.0
  %379 = vmatprep.subr.mxu0 0.0
  %380 = vmatpush1.msra.mxu0 0.0
  %381 = vmatprep.subr.mxu0 0.0
  %382 = vmatpush1.msra.mxu0 0.0
  %383 = vmatprep.subr.mxu0 0.0
  %384 = vmatpush1.msra.mxu0 0.0
  %385 = vmatprep.subr.mxu0 0.0
  %386 = vmatpush1.msra.mxu0 0.0
  %387 = vmatprep.subr.mxu0 0.0
  %388 = vmatpush1.msra.mxu0 0.0
  %389 = vmatprep.subr.mxu0 0.0
  %390 = vmatpush1.msra.mxu0 0.0
  %391 = vmatprep.subr.mxu0 0.0
  %392 = vmatpush1.msra.mxu0 0.0
  %393 = vmatprep.subr.mxu0 0.0
  %394 = vmatpush1.msra.mxu0 0.0
  %395 = vmatprep.subr.mxu0 0.0
  %396 = vmatpush1.msra.mxu0 0.0
  %397 = vmatprep.mubr.f32.mxu0 0.0
  %398 = vmatmul.mubr.f32.gmra.mrb[0].mxu0 %v324
  %v399 = vpop.f32.mrb[0].mxu0
  %v400 = vadd.f32 %v322, %v399
  %v401 = vpop.f32.mrb[0].mxu0
  %402 = vmatprep.mubr.f32.mxu0 0.0
  %403 = vmatmul.mubr.f32.gmra.mrb[0].mxu0 %v327
  %v404 = vpop.f32.mrb[0].mxu0
  %v405 = vadd.f32 %v322, %v404
  %v406 = vpop.f32.mrb[0].mxu0
  %407 = vdwg.mxu0
  %v408 = vmul.f32 %v400, 0.5
  %v409 = vmul.f32 %v405, 0.5
  %v410 = vmul.f32 %v400, 0.70710677
  %v411 = vmul.f32 %v405, 0.70710677
  %v412 = verf.f32.pop %v410
  %v413 = verf.f32.pop %v411
  %v414 = vadd.f32 %v412, 1.0
  %v415 = vadd.f32 %v413, 1.0
  %v416 = vmul.f32 %v408, %v414
  %v417 = vmul.f32 %v409, %v415
  %v418 = vlaneseq
  %v419 = vshrl.u32 %v418, 7
  %v420 = vsub.s32 3, %v419
  %v421 = vrot.slane %v273, %v420
  %vm422 = vcmask 97280
  %v424 = vsel %vm422, %v416, 0
  %v427 = vsel %vm422, %v417, 0
  %vm429 = vcmask 1043456
  %v431 = vsel %vm429, %v277, 0
  %433 = vmatprep.subr.mxu0 0.0
  %434 = vmatpush1.msra.mxu0 %v276
  %435 = vmatprep.subr.mxu0 0.0
  %436 = vmatpush1.msra.mxu0 %v431
  %437 = vmatprep.subr.mxu0 0.0
  %438 = vmatpush1.msra.mxu0 0.0
  %439 = vmatprep.subr.mxu0 0.0
  %440 = vmatpush1.msra.mxu0 0.0
  %441 = vmatprep.subr.mxu0 0.0
  %442 = vmatpush1.msra.mxu0 0.0
  %443 = vmatprep.subr.mxu0 0.0
  %444 = vmatpush1.msra.mxu0 0.0
  %445 = vmatprep.subr.mxu0 0.0
  %446 = vmatpush1.msra.mxu0 0.0
  %447 = vmatprep.subr.mxu0 0.0
  %448 = vmatpush1.msra.mxu0 0.0
  %449 = vmatprep.subr.mxu0 0.0
  %450 = vmatpush1.msra.mxu0 0.0
  %451 = vmatprep.subr.mxu0 0.0
  %452 = vmatpush1.msra.mxu0 0.0
  %453 = vmatprep.subr.mxu0 0.0
  %454 = vmatpush1.msra.mxu0 0.0
  %455 = vmatprep.subr.mxu0 0.0
  %456 = vmatpush1.msra.mxu0 0.0
  %457 = vmatprep.subr.mxu0 0.0
  %458 = vmatpush1.msra.mxu0 0.0
  %459 = vmatprep.subr.mxu0 0.0
  %460 = vmatpush1.msra.mxu0 0.0
  %461 = vmatprep.subr.mxu0 0.0
  %462 = vmatpush1.msra.mxu0 0.0
  %463 = vmatprep.subr.mxu0 0.0
  %464 = vmatpush1.msra.mxu0 0.0
  %465 = vmatprep.subr.mxu0 0.0
  %466 = vmatpush1.msra.mxu0 0.0
  %467 = vmatprep.subr.mxu0 0.0
  %468 = vmatpush1.msra.mxu0 0.0
  %469 = vmatprep.subr.mxu0 0.0
  %470 = vmatpush1.msra.mxu0 0.0
  %471 = vmatprep.subr.mxu0 0.0
  %472 = vmatpush1.msra.mxu0 0.0
  %473 = vmatprep.subr.mxu0 0.0
  %474 = vmatpush1.msra.mxu0 0.0
  %475 = vmatprep.subr.mxu0 0.0
  %476 = vmatpush1.msra.mxu0 0.0
  %477 = vmatprep.subr.mxu0 0.0
  %478 = vmatpush1.msra.mxu0 0.0
  %479 = vmatprep.subr.mxu0 0.0
  %480 = vmatpush1.msra.mxu0 0.0
  %481 = vmatprep.subr.mxu0 0.0
  %482 = vmatpush1.msra.mxu0 0.0
  %483 = vmatprep.subr.mxu0 0.0
  %484 = vmatpush1.msra.mxu0 0.0
  %485 = vmatprep.subr.mxu0 0.0
  %486 = vmatpush1.msra.mxu0 0.0
  %487 = vmatprep.subr.mxu0 0.0
  %488 = vmatpush1.msra.mxu0 0.0
  %489 = vmatprep.subr.mxu0 0.0
  %490 = vmatpush1.msra.mxu0 0.0
  %491 = vmatprep.subr.mxu0 0.0
  %492 = vmatpush1.msra.mxu0 0.0
  %493 = vmatprep.subr.mxu0 0.0
  %494 = vmatpush1.msra.mxu0 0.0
  %495 = vmatprep.subr.mxu0 0.0
  %496 = vmatpush1.msra.mxu0 0.0
  %497 = vmatprep.mubr.f32.mxu0 0.0
  %498 = vmatmul.mubr.f32.gmra.mrb[0].mxu0 %v424
  %v499 = vpop.f32.mrb[0].mxu0
  %v500 = vadd.f32 %v421, %v499
  %v501 = vpop.f32.mrb[0].mxu0
  %502 = vmatprep.mubr.f32.mxu0 0.0
  %503 = vmatmul.mubr.f32.gmra.mrb[0].mxu0 %v427
  %v504 = vpop.f32.mrb[0].mxu0
  %v505 = vadd.f32 %v421, %v504
  %v506 = vpop.f32.mrb[0].mxu0
  %507 = vdwg.mxu0
  %vm508 = vcmask 56320
  %v509 = vsel %vm508, %v500, 0.0
  %510 = vadd.xlane.f32.xlu0 %v509
  %v511 = vpop.xlane.xlu0 %510
  %v512 = vsel %vm508, %v505, 0.0
  %513 = vadd.xlane.f32.xlu0 %v512
  %v514 = vpop.xlane.xlu0 %513
  %v515 = vrcp.pop 7.0
  %v516 = vmul.f32 %v511, %v515
  %v517 = vmul.f32 %v514, %v515
  %v518 = vsub.f32 %v500, %v516
  %v519 = vsub.f32 %v505, %v517
  %v520 = vmul.f32 %v518, %v518
  %v521 = vmul.f32 %v519, %v519
  %v522 = vsel %vm508, %v520, 0.0
  %523 = vadd.xlane.f32.xlu0 %v522
  %v524 = vpop.xlane.xlu0 %523
  %v525 = vsel %vm508, %v521, 0.0
  %526 = vadd.xlane.f32.xlu0 %v525
  %v527 = vpop.xlane.xlu0 %526
  %v528 = vmul.f32 %v524, %v515
  %v529 = vmul.f32 %v527, %v515
  %v530 = vadd.f32 %v528, 1e-05
  %v531 = vadd.f32 %v529, 1e-05
  %v532 = vrsqrt.pop %v530
  %v533 = vrsqrt.pop %v531
  %v534 = vmul.f32 %v518, %v532
  %v535 = vmul.f32 %v519, %v533
  %v536 = vlaneseq
  %v537 = vshrl.u32 %v536, 7
  %v538 = vsub.s32 4, %v537
  %v539 = vrot.slane %v273, %v538
  %v540 = vmul.f32 %v534, %v539
  %v541 = vmul.f32 %v535, %v539
  %v542 = vlaneseq
  %v543 = vshrl.u32 %v542, 7
  %v544 = vsub.s32 5, %v543
  %v545 = vrot.slane %v273, %v544
  %v546 = vadd.f32 %v540, %v545
  %v547 = vadd.f32 %v541, %v545
  %v549 = vsel %vm508, %v546, 0
  %v552 = vsel %vm508, %v547, 0
  %v555 = vsel %vm329, %v278, 0
  %557 = vmatprep.subr.mxu0 0.0
  %558 = vmatpush1.msra.mxu0 %v555
  %559 = vmatprep.subr.mxu0 0.0
  %560 = vmatpush1.msra.mxu0 0.0
  %561 = vmatprep.subr.mxu0 0.0
  %562 = vmatpush1.msra.mxu0 0.0
  %563 = vmatprep.subr.mxu0 0.0
  %564 = vmatpush1.msra.mxu0 0.0
  %565 = vmatprep.subr.mxu0 0.0
  %566 = vmatpush1.msra.mxu0 0.0
  %567 = vmatprep.subr.mxu0 0.0
  %568 = vmatpush1.msra.mxu0 0.0
  %569 = vmatprep.subr.mxu0 0.0
  %570 = vmatpush1.msra.mxu0 0.0
  %571 = vmatprep.subr.mxu0 0.0
  %572 = vmatpush1.msra.mxu0 0.0
  %573 = vmatprep.subr.mxu0 0.0
  %574 = vmatpush1.msra.mxu0 0.0
  %575 = vmatprep.subr.mxu0 0.0
  %576 = vmatpush1.msra.mxu0 0.0
  %577 = vmatprep.subr.mxu0 0.0
  %578 = vmatpush1.msra.mxu0 0.0
  %579 = vmatprep.subr.mxu0 0.0
  %580 = vmatpush1.msra.mxu0 0.0
  %581 = vmatprep.subr.mxu0 0.0
  %582 = vmatpush1.msra.mxu0 0.0
  %583 = vmatprep.subr.mxu0 0.0
  %584 = vmatpush1.msra.mxu0 0.0
  %585 = vmatprep.subr.mxu0 0.0
  %586 = vmatpush1.msra.mxu0 0.0
  %587 = vmatprep.subr.mxu0 0.0
  %588 = vmatpush1.msra.mxu0 0.0
  %589 = vmatprep.subr.mxu0 0.0
  %590 = vmatpush1.msra.mxu0 0.0
  %591 = vmatprep.subr.mxu0 0.0
  %592 = vmatpush1.msra.mxu0 0.0
  %593 = vmatprep.subr.mxu0 0.0
  %594 = vmatpush1.msra.mxu0 0.0
  %595 = vmatprep.subr.mxu0 0.0
  %596 = vmatpush1.msra.mxu0 0.0
  %597 = vmatprep.subr.mxu0 0.0
  %598 = vmatpush1.msra.mxu0 0.0
  %599 = vmatprep.subr.mxu0 0.0
  %600 = vmatpush1.msra.mxu0 0.0
  %601 = vmatprep.subr.mxu0 0.0
  %602 = vmatpush1.msra.mxu0 0.0
  %603 = vmatprep.subr.mxu0 0.0
  %604 = vmatpush1.msra.mxu0 0.0
  %605 = vmatprep.subr.mxu0 0.0
  %606 = vmatpush1.msra.mxu0 0.0
  %607 = vmatprep.subr.mxu0 0.0
  %608 = vmatpush1.msra.mxu0 0.0
  %609 = vmatprep.subr.mxu0 0.0
  %610 = vmatpush1.msra.mxu0 0.0
  %611 = vmatprep.subr.mxu0 0.0
  %612 = vmatpush1.msra.mxu0 0.0
  %613 = vmatprep.subr.mxu0 0.0
  %614 = vmatpush1.msra.mxu0 0.0
  %615 = vmatprep.subr.mxu0 0.0
  %616 = vmatpush1.msra.mxu0 0.0
  %617 = vmatprep.subr.mxu0 0.0
  %618 = vmatpush1.msra.mxu0 0.0
  %619 = vmatprep.subr.mxu0 0.0
  %620 = vmatpush1.msra.mxu0 0.0
  %621 = vmatprep.mubr.f32.mxu0 0.0
  %622 = vmatmul.mubr.f32.gmra.mrb[0].mxu0 %v549
  %v623 = vpop.f32.mrb[0].mxu0
  %v624 = vadd.f32 0.0, %v623
  %v625 = vpop.f32.mrb[0].mxu0
  %626 = vmatprep.mubr.f32.mxu0 0.0
  %627 = vmatmul.mubr.f32.gmra.mrb[0].mxu0 %v552
  %v628 = vpop.f32.mrb[0].mxu0
  %v629 = vadd.f32 0.0, %v628
  %v630 = vpop.f32.mrb[0].mxu0
  %631 = vdwg.mxu0
  %632 = vst [vmem:[%s4] sm:$0xff] %v624
  %633 = vst [vmem:[%s4 + $0x8] sm:$0xff] %v629
  // Predicated region
  $region18: #{emoevent_forward.1} parent=0 // pred_check
    _
  $region19: #{emoevent_forward.1} parent=0 // pred_check_branch
    %635 = sbr.rel (0) target = $region21
  $region20: #{emoevent_forward.1} parent=0 // pred_region
    _
  $region21: #{emoevent_forward.1} parent=0 // pred_fallthru
    _
  // Predicated region
  $region22: #{emoevent_forward.1} parent=0 // pred_check
    _
  $region23: #{emoevent_forward.1} parent=0 // pred_check_branch
    %637 = sbr.rel (0) target = $region25
  $region24: #{emoevent_forward.1} parent=0 // pred_region
    _
  $region25: #{emoevent_forward.1} parent=0 // pred_fallthru
    _

</llo_original>
